<compile_context>
chip_gen: v7x
topology: tpu7x:2x2x1
jax: 0.10.0
libtpu: 0.0.40
codegen_flags: <defaults>
</compile_context>

<pallas_src>
import jax
import jax.numpy as jnp
from jax.experimental import pallas as pl
from jax.experimental.pallas import tpu as pltpu

IN_F = 10       # state features
HID = 16        # hidden width
OUT_F = 2       # actions
OUT_PAD = 8     # compact padded output width written by the kernel
LANE = 128      # lane width of the resident weight/bias slabs


def _round_up(x, m):
    return (x + m - 1) // m * m


def actor_kernel(x_ref, w_ref, b_ref, o_ref):
    # x_ref: (TB, 10)      f32 input rows (cast to the matmul dtype in-kernel)
    # w_ref: (3, 16, 128)  matmul dtype; layer l weight stored as (in, out), zero-padded
    # b_ref: (3, 1, 128)   f32 biases, zero-padded
    # o_ref: (TB, 8)       f32 compact output; cols 0..1 are real
    dt = w_ref.dtype
    x = x_ref[...].astype(dt)                                    # (TB, 10)

    # fc1 + relu: contract over the 10 meaningful weight rows (K=10, N=128).
    h1 = jnp.dot(x, w_ref[0][:IN_F, :], preferred_element_type=jnp.float32)
    h1 = jnp.maximum(h1 + b_ref[0], 0.0)                         # (TB, 128); cols >= 16 are 0

    # fc2 + relu: K=16 contraction (only the first 16 cols of h1 are nonzero).
    h2 = jnp.dot(h1[:, :HID].astype(dt), w_ref[1],
                 preferred_element_type=jnp.float32)
    h2 = jnp.maximum(h2 + b_ref[1], 0.0)

    # fc3: K=16.
    logits = jnp.dot(h2[:, :HID].astype(dt), w_ref[2],
                     preferred_element_type=jnp.float32) + b_ref[2]
    lo = logits[:, :OUT_PAD]                                     # (TB, 8)

    # 100 * sigmoid, numerically stable (no inf intermediates); exp on the EUP.
    z = jnp.exp(-jnp.abs(lo))
    inv = 1.0 / (1.0 + z)
    o_ref[...] = 100.0 * jnp.where(lo >= 0.0, inv, z * inv)


def pack_params(params, matmul_dtype=jnp.bfloat16):
    """params = (w1, b1, w2, b2, w3, b3) in PyTorch layout: w (out, in), b (out,).

    Returns:
      w_slab (3, 16, 128) matmul_dtype : w_slab[l, :in_l, :out_l] = w_l.T
      b_slab (3, 1, 128)  float32      : b_slab[l, 0, :out_l]     = b_l

    bf16 matmul operands are the right choice on all generations (v5e/v6e/v7x
    MXUs are full-rate bf16; elementwise math stays f32 in the kernel).
    """
    w1, b1, w2, b2, w3, b3 = params
    w_slab = jnp.zeros((3, HID, LANE), jnp.float32)
    w_slab = w_slab.at[0, :IN_F, :HID].set(w1.T)
    w_slab = w_slab.at[1, :HID, :HID].set(w2.T)
    w_slab = w_slab.at[2, :HID, :OUT_F].set(w3.T)
    b_slab = jnp.zeros((3, 1, LANE), jnp.float32)
    b_slab = b_slab.at[0, 0, :HID].set(b1)
    b_slab = b_slab.at[1, 0, :HID].set(b2)
    b_slab = b_slab.at[2, 0, :OUT_F].set(b3)
    return w_slab.astype(matmul_dtype), b_slab


def actor_forward(x, packed, *, block_batch=2048):
    """x: (B, 10) float32; packed = (w_slab, b_slab) from pack_params()."""
    w_slab, b_slab = packed
    batch = x.shape[0]
    assert x.shape[1] == IN_F

    # Batch tile: multiple of 16 (legal second-to-last block dim), <= batch-ish.
    tb = _round_up(min(block_batch, batch), 16)
    # If a single block would cover the whole batch, split into two grid steps
    # so both v7x TensorCores get work under dimension_semantics=("parallel",).
    if pl.cdiv(batch, tb) < 2 and batch >= 32:
        tb = _round_up(pl.cdiv(batch, 2), 16)
    b_pad = _round_up(batch, tb)
    grid = (b_pad // tb,)

    # Pad only the batch rows, only when needed (tiny (B,10) f32 pad; no
    # feature padding or dtype cast in the wrapper).
    x_in = x if b_pad == batch else jnp.pad(x, ((0, b_pad - batch), (0, 0)))

    itemsize = jnp.dtype(w_slab.dtype).itemsize
    cost = pl.CostEstimate(
        flops=2 * b_pad * LANE * (IN_F + HID + HID),
        transcendentals=b_pad * OUT_PAD,
        bytes_accessed=(b_pad * IN_F * 4                 # x
                        + 3 * HID * LANE * itemsize      # weight slab
                        + 3 * LANE * 4                   # bias slab
                        + b_pad * OUT_PAD * 4),          # compact output
    )

    out = pl.pallas_call(
        actor_kernel,
        out_shape=jax.ShapeDtypeStruct((b_pad, OUT_PAD), jnp.float32),
        grid_spec=pltpu.PrefetchScalarGridSpec(
            num_scalar_prefetch=0,
            grid=grid,
            in_specs=[
                pl.BlockSpec((tb, IN_F), lambda i: (i, 0)),          # x streamed
                pl.BlockSpec((3, HID, LANE), lambda i: (0, 0, 0)),   # weights resident
                pl.BlockSpec((3, 1, LANE), lambda i: (0, 0, 0)),     # biases resident
            ],
            out_specs=pl.BlockSpec((tb, OUT_PAD), lambda i: (i, 0)),
        ),
        compiler_params=pltpu.CompilerParams(
            dimension_semantics=("parallel",),
        ),
        cost_estimate=cost,
    )(x_in, w_slab, b_slab)

    return out[:batch, :OUT_F]


def init_params(key):
    """PyTorch nn.Linear default init: U[-1/sqrt(fan_in), +1/sqrt(fan_in)]."""
    ks = jax.random.split(key, 6)

    def linear(kw, kb, fan_in, fan_out):
        bound = 1.0 / jnp.sqrt(fan_in)
        w = jax.random.uniform(kw, (fan_out, fan_in), jnp.float32, -bound, bound)
        b = jax.random.uniform(kb, (fan_out,), jnp.float32, -bound, bound)
        return w, b

    w1, b1 = linear(ks[0], ks[1], IN_F, HID)
    w2, b2 = linear(ks[2], ks[3], HID, HID)
    w3, b3 = linear(ks[4], ks[5], HID, OUT_F)
    return (w1, b1, w2, b2, w3, b3)


def actor_ref(x, params, matmul_dtype=jnp.float32):
    """Pure-JAX reference. matmul_dtype=bf16 mirrors the kernel's mixed precision."""
    w1, b1, w2, b2, w3, b3 = params

    def mm(a, w):
        return jnp.dot(a.astype(matmul_dtype), w.T.astype(matmul_dtype),
                       preferred_element_type=jnp.float32)

    h1 = jnp.maximum(mm(x, w1) + b1, 0.0)
    h2 = jnp.maximum(mm(h1, w2) + b2, 0.0)
    logits = mm(h2, w3) + b3
    return 100.0 * jax.nn.sigmoid(logits)


if __name__ == "__main__":
    key = jax.random.PRNGKey(0)
    k_params, k_x1, k_x2, k_x3 = jax.random.split(key, 4)

    params = init_params(k_params)
    packed = pack_params(params)  # bf16 matmul operands (all TPU generations)

    # Small demo batch (single grid step).
    x = jax.random.normal(k_x1, (8, IN_F), jnp.float32)
    out = jax.block_until_ready(actor_forward(x, packed))
    assert out.shape == (8, OUT_F), out.shape
    ref_matched = actor_ref(x, params, matmul_dtype=jnp.bfloat16)  # same numerics
    ref_f32 = actor_ref(x, params, matmul_dtype=jnp.float32)       # exact semantics
    assert jnp.allclose(out, ref_matched, atol=5e-2, rtol=1e-3), (out, ref_matched)
    assert jnp.allclose(out, ref_f32, atol=2.5), (out, ref_f32)    # bf16-matmul tolerance

    # Non-multiple batch with a small tile: exercises batch padding + 3-step grid.
    x2 = jax.random.normal(k_x2, (40, IN_F), jnp.float32)
    out2 = jax.block_until_ready(actor_forward(x2, packed, block_batch=16))
    ref2 = actor_ref(x2, params, matmul_dtype=jnp.bfloat16)
    assert out2.shape == (40, OUT_F), out2.shape
    assert jnp.allclose(out2, ref2, atol=5e-2, rtol=1e-3), (out2, ref2)

    # Default tile with a moderate batch: exercises the 2-step (dual-TC) split.
    x3 = jax.random.normal(k_x3, (130, IN_F), jnp.float32)
    out3 = jax.block_until_ready(actor_forward(x3, packed))
    ref3 = actor_ref(x3, params, matmul_dtype=jnp.bfloat16)
    assert out3.shape == (130, OUT_F), out3.shape
    assert jnp.allclose(out3, ref3, atol=5e-2, rtol=1e-3), (out3, ref3)

    print("KERNEL_OK")
</pallas_src>

<mosaic_0001>
module attributes {stable_mosaic.version = 11 : i64} {
  func.func @actor_kernel(%arg0: i32, %arg1: memref<16x10xf32, #tpu.memory_space<vmem>>, %arg2: memref<3x16x128xbf16, #tpu.memory_space<vmem>>, %arg3: memref<3x1x128xf32, #tpu.memory_space<vmem>>, %arg4: memref<16x8xf32, #tpu.memory_space<vmem>>) attributes {dimension_semantics = [#tpu.dimension_semantics<parallel>], iteration_bounds = array<i64: 1>, scalar_prefetch = 0 : i64, scratch_operands = 0 : i64, tpu.core_type = #tpu.core_type<tc>, window_params = [{transform_indices = @transform_0, window_bounds = array<i64: 16, 10>}, {pipeline_mode = #tpu.pipeline_mode<synchronous>, transform_indices = @transform_1, window_bounds = array<i64: 3, 16, 128>}, {pipeline_mode = #tpu.pipeline_mode<synchronous>, transform_indices = @transform_2, window_bounds = array<i64: 3, 1, 128>}, {transform_indices = @transform_3, window_bounds = array<i64: 16, 8>}]} {
    %c0 = arith.constant 0 : index
    %c0_0 = arith.constant 0 : index
    %0 = vector.load %arg1[%c0, %c0_0] : memref<16x10xf32, #tpu.memory_space<vmem>>, vector<16x10xf32>
    %1 = arith.truncf %0 : vector<16x10xf32> to vector<16x10xbf16>
    %c0_1 = arith.constant 0 : index
    %c0_2 = arith.constant 0 : index
    %c0_3 = arith.constant 0 : index
    %2 = vector.load %arg2[%c0_1, %c0_2, %c0_3] : memref<3x16x128xbf16, #tpu.memory_space<vmem>>, vector<1x16x128xbf16>
    %3 = vector.shape_cast %2 : vector<1x16x128xbf16> to vector<16x128xbf16>
    %4 = vector.extract_strided_slice %3 {offsets = [0, 0], sizes = [10, 128], strides = [1, 1]} : vector<16x128xbf16> to vector<10x128xbf16>
    %cst = arith.constant dense<0.000000e+00> : vector<16x128xf32>
    %5 = tpu.matmul %1, %4, %cst {dimension_numbers = #tpu.dot_dimension_numbers<[1], [0], [0], [1], [0, 0, 1, 1], [], []>} : vector<16x10xbf16>, vector<10x128xbf16>, vector<16x128xf32> -> vector<16x128xf32>
    %c0_4 = arith.constant 0 : index
    %c0_5 = arith.constant 0 : index
    %c0_6 = arith.constant 0 : index
    %6 = vector.load %arg3[%c0_4, %c0_5, %c0_6] : memref<3x1x128xf32, #tpu.memory_space<vmem>>, vector<1x1x128xf32>
    %7 = vector.shape_cast %6 : vector<1x1x128xf32> to vector<1x128xf32>
    %8 = vector.broadcast %7 : vector<1x128xf32> to vector<16x128xf32>
    %9 = arith.addf %5, %8 : vector<16x128xf32>
    %cst_7 = arith.constant 0.000000e+00 : f32
    %10 = vector.broadcast %cst_7 : f32 to vector<16x128xf32>
    %11 = arith.maximumf %9, %10 : vector<16x128xf32>
    %12 = vector.extract_strided_slice %11 {offsets = [0, 0], sizes = [16, 16], strides = [1, 1]} : vector<16x128xf32> to vector<16x16xf32>
    %13 = arith.truncf %12 : vector<16x16xf32> to vector<16x16xbf16>
    %c1 = arith.constant 1 : index
    %c0_8 = arith.constant 0 : index
    %c0_9 = arith.constant 0 : index
    %14 = vector.load %arg2[%c1, %c0_8, %c0_9] : memref<3x16x128xbf16, #tpu.memory_space<vmem>>, vector<1x16x128xbf16>
    %15 = vector.shape_cast %14 : vector<1x16x128xbf16> to vector<16x128xbf16>
    %cst_10 = arith.constant dense<0.000000e+00> : vector<16x128xf32>
    %16 = tpu.matmul %13, %15, %cst_10 {dimension_numbers = #tpu.dot_dimension_numbers<[1], [0], [0], [1], [0, 0, 1, 1], [], []>} : vector<16x16xbf16>, vector<16x128xbf16>, vector<16x128xf32> -> vector<16x128xf32>
    %c1_11 = arith.constant 1 : index
    %c0_12 = arith.constant 0 : index
    %c0_13 = arith.constant 0 : index
    %17 = vector.load %arg3[%c1_11, %c0_12, %c0_13] : memref<3x1x128xf32, #tpu.memory_space<vmem>>, vector<1x1x128xf32>
    %18 = vector.shape_cast %17 : vector<1x1x128xf32> to vector<1x128xf32>
    %19 = vector.broadcast %18 : vector<1x128xf32> to vector<16x128xf32>
    %20 = arith.addf %16, %19 : vector<16x128xf32>
    %cst_14 = arith.constant 0.000000e+00 : f32
    %21 = vector.broadcast %cst_14 : f32 to vector<16x128xf32>
    %22 = arith.maximumf %20, %21 : vector<16x128xf32>
    %23 = vector.extract_strided_slice %22 {offsets = [0, 0], sizes = [16, 16], strides = [1, 1]} : vector<16x128xf32> to vector<16x16xf32>
    %24 = arith.truncf %23 : vector<16x16xf32> to vector<16x16xbf16>
    %c2 = arith.constant 2 : index
    %c0_15 = arith.constant 0 : index
    %c0_16 = arith.constant 0 : index
    %25 = vector.load %arg2[%c2, %c0_15, %c0_16] : memref<3x16x128xbf16, #tpu.memory_space<vmem>>, vector<1x16x128xbf16>
    %26 = vector.shape_cast %25 : vector<1x16x128xbf16> to vector<16x128xbf16>
    %cst_17 = arith.constant dense<0.000000e+00> : vector<16x128xf32>
    %27 = tpu.matmul %24, %26, %cst_17 {dimension_numbers = #tpu.dot_dimension_numbers<[1], [0], [0], [1], [0, 0, 1, 1], [], []>} : vector<16x16xbf16>, vector<16x128xbf16>, vector<16x128xf32> -> vector<16x128xf32>
    %c2_18 = arith.constant 2 : index
    %c0_19 = arith.constant 0 : index
    %c0_20 = arith.constant 0 : index
    %28 = vector.load %arg3[%c2_18, %c0_19, %c0_20] : memref<3x1x128xf32, #tpu.memory_space<vmem>>, vector<1x1x128xf32>
    %29 = vector.shape_cast %28 : vector<1x1x128xf32> to vector<1x128xf32>
    %30 = vector.broadcast %29 : vector<1x128xf32> to vector<16x128xf32>
    %31 = arith.addf %27, %30 : vector<16x128xf32>
    %32 = vector.extract_strided_slice %31 {offsets = [0, 0], sizes = [16, 8], strides = [1, 1]} : vector<16x128xf32> to vector<16x8xf32>
    %33 = math.absf %32 : vector<16x8xf32>
    %cst_21 = arith.constant 0.000000e+00 : f32
    %34 = vector.broadcast %cst_21 : f32 to vector<16x8xf32>
    %35 = arith.subf %34, %33 : vector<16x8xf32>
    %36 = math.exp %35 : vector<16x8xf32>
    %cst_22 = arith.constant 1.000000e+00 : f32
    %37 = vector.broadcast %cst_22 : f32 to vector<16x8xf32>
    %38 = arith.addf %37, %36 : vector<16x8xf32>
    %cst_23 = arith.constant 1.000000e+00 : f32
    %39 = vector.broadcast %cst_23 : f32 to vector<16x8xf32>
    %40 = arith.divf %39, %38 : vector<16x8xf32>
    %cst_24 = arith.constant 0.000000e+00 : f32
    %41 = vector.broadcast %cst_24 : f32 to vector<16x8xf32>
    %42 = arith.cmpf oge, %32, %41 : vector<16x8xf32>
    %43 = arith.mulf %36, %40 : vector<16x8xf32>
    %44 = arith.select %42, %40, %43 : vector<16x8xi1>, vector<16x8xf32>
    %cst_25 = arith.constant 1.000000e+02 : f32
    %45 = vector.broadcast %cst_25 : f32 to vector<16x8xf32>
    %46 = arith.mulf %45, %44 : vector<16x8xf32>
    %c0_26 = arith.constant 0 : index
    %c0_27 = arith.constant 0 : index
    %47 = vector.load %arg4[%c0_26, %c0_27] : memref<16x8xf32, #tpu.memory_space<vmem>>, vector<16x8xf32>
    tpu.vector_store %arg4[%c0_26, %c0_27], %46 {strides = array<i32>} : memref<16x8xf32, #tpu.memory_space<vmem>>, vector<16x8xf32>,
    return
  }
  func.func @transform_0(%arg0: i32) -> (i32, i32) {
    %c0_i32 = arith.constant 0 : i32
    %c0_i32_0 = arith.constant 0 : i32
    return %arg0, %c0_i32 : i32, i32
  }
  func.func @transform_1(%arg0: i32) -> (i32, i32, i32) {
    %c0_i32 = arith.constant 0 : i32
    %c0_i32_0 = arith.constant 0 : i32
    %c0_i32_1 = arith.constant 0 : i32
    %c0_i32_2 = arith.constant 0 : i32
    return %c0_i32, %c0_i32_0, %c0_i32_1 : i32, i32, i32
  }
  func.func @transform_2(%arg0: i32) -> (i32, i32, i32) {
    %c0_i32 = arith.constant 0 : i32
    %c0_i32_0 = arith.constant 0 : i32
    %c0_i32_1 = arith.constant 0 : i32
    %c0_i32_2 = arith.constant 0 : i32
    return %c0_i32, %c0_i32_0, %c0_i32_1 : i32, i32, i32
  }
  func.func @transform_3(%arg0: i32) -> (i32, i32) {
    %c0_i32 = arith.constant 0 : i32
    %c0_i32_0 = arith.constant 0 : i32
    return %arg0, %c0_i32 : i32, i32
  }
}

</mosaic_0001>

<llo_original>
// kernel: tpu_custom_call.1
$region0: #{tpu_custom_call.1}
  #allocation0 [shape = 'u32[]', space=smem, size = 0x4, offset = 0x4, fixed_abs, tag = 'smem constant byte address 0x4 - core index']
  #allocation1 [shape = 'u32[144,128]{1,0:T(1,128)}', space=vmem, size = 0x12000, scoped, tag = 'internal scratch']
  %s0 = inlined_call_operand.hbm [shape: f32[16,10], index: 0, kind: input, shape index: {}]
  %s1 = inlined_call_operand.hbm [shape: bf16[3,16,128], index: 1, kind: input, shape index: {}]
  %s2 = inlined_call_operand.vmem [shape: f32[3,1,128], index: 2, kind: input, shape index: {}]
  %s3 = inlined_call_operand.vmem [shape: f32[16,8], index: 3, kind: output, shape index: {}]
  %s4 = sld [smem:[#allocation0]]
  $region30: #{tpu_custom_call.1} parent=0
    _
  %s6 = ssub.s32 1, %s4
  %s7 = scalar_select 0, %s6, %s4
  $region1: #{tpu_custom_call.1} parent=0
    #allocation2 [shape = 'u8[8192]{0}', space=vmem, size = 0x2000, scoped, tag = 'input window, operand 0, single buffered']
    #allocation3 [shape = 's32[1]{0}', space=sflag, size = 0x4, scoped, tag = 'scoped memory for tpu_custom_call.1']
    #allocation4 [shape = 'u8[12288]{0}', space=vmem, size = 0x3000, scoped, tag = 'input window, operand 1, single buffered']
    #allocation5 [shape = 's32[1]{0}', space=sflag, size = 0x4, scoped, tag = 'scoped memory for tpu_custom_call.1']
    %8 = vsyncpa [#allocation3], 0
    %9 = vsyncpa [#allocation5], 0
    // Predicated region
    $region2: #{tpu_custom_call.1} parent=1 // pred_check
      _
    $region3: #{tpu_custom_call.1} parent=1 // pred_check_branch
      %11 = sbr.rel (0) target = $region5
    $region4: #{tpu_custom_call.1} parent=1 // pred_region
      %s13 = ssub.s32 256, 256
      %14 = vsyncadd [#allocation3], %s13
      %s15 = sshll.u32 [#allocation2], 4
      %s16 = int_to_ptr.vmem [resolvable:$true] %s15
      %21 = dma.hbm_to_vmem [thread:$0]  %s0, 256, %s16, [#allocation3], 128, 128, 8
    $region5: #{tpu_custom_call.1} parent=1 // pred_fallthru
      _
    // Predicated region
    $region6: #{tpu_custom_call.1} parent=1 // pred_check
      _
    $region7: #{tpu_custom_call.1} parent=1 // pred_check_branch
      %23 = sbr.rel (0) target = $region9
    $region8: #{tpu_custom_call.1} parent=1 // pred_region
      %s25 = ssub.s32 384, 384
      %26 = vsyncadd [#allocation5], %s25
      %s27 = sshll.u32 [#allocation4], 4
      %s28 = int_to_ptr.vmem [resolvable:$true] %s27
      %33 = dma.hbm_to_vmem [thread:$0]  %s1, 384, %s28, [#allocation5], 64, 64, 4
    $region9: #{tpu_custom_call.1} parent=1 // pred_fallthru
      _
    // Predicated region
    $region10: #{tpu_custom_call.1} parent=1 // pred_check
      _
    $region11: #{tpu_custom_call.1} parent=1 // pred_check_branch
      %35 = sbr.rel (0) target = $region13
    $region12: #{tpu_custom_call.1} parent=1 // pred_region
      _
    $region13: #{tpu_custom_call.1} parent=1 // pred_fallthru
      _
    // Predicated region
    $region14: #{tpu_custom_call.1} parent=1 // pred_check
      _
    $region15: #{tpu_custom_call.1} parent=1 // pred_check_branch
      %37 = sbr.rel (0) target = $region17
    $region16: #{tpu_custom_call.1} parent=1 // pred_region
      %38 = dma.done [#allocation3], 256
    $region17: #{tpu_custom_call.1} parent=1 // pred_fallthru
      _
    // Predicated region
    $region18: #{tpu_custom_call.1} parent=1 // pred_check
      _
    $region19: #{tpu_custom_call.1} parent=1 // pred_check_branch
      %40 = sbr.rel (0) target = $region21
    $region20: #{tpu_custom_call.1} parent=1 // pred_region
      %41 = dma.done [#allocation5], 384
    $region21: #{tpu_custom_call.1} parent=1 // pred_fallthru
      _
    %v43 = vld [vmem:[#allocation2] sm:$0xff]
    %v44 = vld [vmem:[#allocation2 + $0x8] sm:$0xff]
    %v45 = vpack.c.bf16 %v44, %v43
    %v46 = vld [vmem:[#allocation4] sm:$0xf]
    %v47 = vld [vmem:[#allocation4 + $0x4] sm:$0xf]
    %v48 = vld [vmem:[%s2] sm:$0x1]
    %v50 = vlaneseq
    %v51 = vshrl.u32 %v50, 7
    %v52 = vsub.s32 0, %v51
    %v53 = vrot.slane %v48, %v52
    %v57 = vunpack.c.l.b16 %v46
    %v58 = vunpack.c.l.b16 %v47
    %v59 = vpack.c.b16 %v58, %v57
    %vm60 = vcmask 80896
    %v62 = vsel %vm60, %v45, 0
    %vm64 = vcmask 1044480
    %v66 = vsel %vm64, %v59, 0
    %68 = vmatprep.subr.bf16.mxu0 0
    %69 = vmatpush1.bf16.msra.mxu0 %v66
    %70 = vmatprep.subr.bf16.mxu0 0
    %71 = vmatpush1.bf16.msra.mxu0 0
    %72 = vmatprep.subr.bf16.mxu0 0
    %73 = vmatpush1.bf16.msra.mxu0 0
    %74 = vmatprep.subr.bf16.mxu0 0
    %75 = vmatpush1.bf16.msra.mxu0 0
    %76 = vmatprep.subr.bf16.mxu0 0
    %77 = vmatpush1.bf16.msra.mxu0 0
    %78 = vmatprep.subr.bf16.mxu0 0
    %79 = vmatpush1.bf16.msra.mxu0 0
    %80 = vmatprep.subr.bf16.mxu0 0
    %81 = vmatpush1.bf16.msra.mxu0 0
    %82 = vmatprep.subr.bf16.mxu0 0
    %83 = vmatpush1.bf16.msra.mxu0 0
    %84 = vmatprep.subr.bf16.mxu0 0
    %85 = vmatpush1.bf16.msra.mxu0 0
    %86 = vmatprep.subr.bf16.mxu0 0
    %87 = vmatpush1.bf16.msra.mxu0 0
    %88 = vmatprep.subr.bf16.mxu0 0
    %89 = vmatpush1.bf16.msra.mxu0 0
    %90 = vmatprep.subr.bf16.mxu0 0
    %91 = vmatpush1.bf16.msra.mxu0 0
    %92 = vmatprep.subr.bf16.mxu0 0
    %93 = vmatpush1.bf16.msra.mxu0 0
    %94 = vmatprep.subr.bf16.mxu0 0
    %95 = vmatpush1.bf16.msra.mxu0 0
    %96 = vmatprep.subr.bf16.mxu0 0
    %97 = vmatpush1.bf16.msra.mxu0 0
    %98 = vmatprep.subr.bf16.mxu0 0
    %99 = vmatpush1.bf16.msra.mxu0 0
    %100 = vmatprep.mubr.bf16.mxu0 0
    %101 = vmatmul.mubr.bf16.gmra.mrb[0].mxu0 %v62
    %v102 = vpop.f32.mrb[0].mxu0
    %v103 = vadd.f32 %v53, %v102
    %v104 = vpop.f32.mrb[0].mxu0
    %v105 = vpop.f32.mrb[0].mxu0
    %v106 = vadd.f32 %v53, %v105
    %v107 = vpop.f32.mrb[0].mxu0
    %108 = vdwg.mxu0
    %v109 = vmax.f32 %v103, 0.0
    %v110 = vmax.f32 %v106, 0.0
    %v111 = vpack.c.bf16 %v110, %v109
    %s112 = scalar_lea.vmem [#allocation4], 8
    %v113 = vld [vmem:[%s112] sm:$0xf]
    %v114 = vld [vmem:[%s112 + $0x4] sm:$0xf]
    %s115 = scalar_lea.vmem %s2, 1
    %v116 = vld [vmem:[%s115] sm:$0x1]
    %v118 = vlaneseq
    %v119 = vshrl.u32 %v118, 7
    %v120 = vsub.s32 0, %v119
    %v121 = vrot.slane %v116, %v120
    %v125 = vunpack.c.l.b16 %v113
    %v126 = vunpack.c.l.b16 %v114
    %v127 = vpack.c.b16 %v126, %v125
    %vm129 = vcmask 130048
    %v131 = vsel %vm129, %v111, 0
    %133 = vmatprep.subr.bf16.mxu0 0
    %134 = vmatpush1.bf16.msra.mxu0 %v127
    %135 = vmatprep.subr.bf16.mxu0 0
    %136 = vmatpush1.bf16.msra.mxu0 0
    %137 = vmatprep.subr.bf16.mxu0 0
    %138 = vmatpush1.bf16.msra.mxu0 0
    %139 = vmatprep.subr.bf16.mxu0 0
    %140 = vmatpush1.bf16.msra.mxu0 0
    %141 = vmatprep.subr.bf16.mxu0 0
    %142 = vmatpush1.bf16.msra.mxu0 0
    %143 = vmatprep.subr.bf16.mxu0 0
    %144 = vmatpush1.bf16.msra.mxu0 0
    %145 = vmatprep.subr.bf16.mxu0 0
    %146 = vmatpush1.bf16.msra.mxu0 0
    %147 = vmatprep.subr.bf16.mxu0 0
    %148 = vmatpush1.bf16.msra.mxu0 0
    %149 = vmatprep.subr.bf16.mxu0 0
    %150 = vmatpush1.bf16.msra.mxu0 0
    %151 = vmatprep.subr.bf16.mxu0 0
    %152 = vmatpush1.bf16.msra.mxu0 0
    %153 = vmatprep.subr.bf16.mxu0 0
    %154 = vmatpush1.bf16.msra.mxu0 0
    %155 = vmatprep.subr.bf16.mxu0 0
    %156 = vmatpush1.bf16.msra.mxu0 0
    %157 = vmatprep.subr.bf16.mxu0 0
    %158 = vmatpush1.bf16.msra.mxu0 0
    %159 = vmatprep.subr.bf16.mxu0 0
    %160 = vmatpush1.bf16.msra.mxu0 0
    %161 = vmatprep.subr.bf16.mxu0 0
    %162 = vmatpush1.bf16.msra.mxu0 0
    %163 = vmatprep.subr.bf16.mxu0 0
    %164 = vmatpush1.bf16.msra.mxu0 0
    %165 = vmatprep.mubr.bf16.mxu0 0
    %166 = vmatmul.mubr.bf16.gmra.mrb[0].mxu0 %v131
    %v167 = vpop.f32.mrb[0].mxu0
    %v168 = vadd.f32 %v121, %v167
    %v169 = vpop.f32.mrb[0].mxu0
    %v170 = vpop.f32.mrb[0].mxu0
    %v171 = vadd.f32 %v121, %v170
    %v172 = vpop.f32.mrb[0].mxu0
    %173 = vdwg.mxu0
    %v174 = vmax.f32 %v168, 0.0
    %v175 = vmax.f32 %v171, 0.0
    %v176 = vpack.c.bf16 %v175, %v174
    %s177 = scalar_lea.vmem [#allocation4], 16
    %v178 = vld [vmem:[%s177] sm:$0xf]
    %v179 = vld [vmem:[%s177 + $0x4] sm:$0xf]
    %s180 = scalar_lea.vmem %s2, 2
    %v181 = vld [vmem:[%s180] sm:$0x1]
    %v183 = vlaneseq
    %v184 = vshrl.u32 %v183, 7
    %v185 = vsub.s32 0, %v184
    %v186 = vrot.slane %v181, %v185
    %v190 = vunpack.c.l.b16 %v178
    %v191 = vunpack.c.l.b16 %v179
    %v192 = vpack.c.b16 %v191, %v190
    %v195 = vsel %vm129, %v176, 0
    %197 = vmatprep.subr.bf16.mxu0 0
    %198 = vmatpush1.bf16.msra.mxu0 %v192
    %199 = vmatprep.subr.bf16.mxu0 0
    %200 = vmatpush1.bf16.msra.mxu0 0
    %201 = vmatprep.subr.bf16.mxu0 0
    %202 = vmatpush1.bf16.msra.mxu0 0
    %203 = vmatprep.subr.bf16.mxu0 0
    %204 = vmatpush1.bf16.msra.mxu0 0
    %205 = vmatprep.subr.bf16.mxu0 0
    %206 = vmatpush1.bf16.msra.mxu0 0
    %207 = vmatprep.subr.bf16.mxu0 0
    %208 = vmatpush1.bf16.msra.mxu0 0
    %209 = vmatprep.subr.bf16.mxu0 0
    %210 = vmatpush1.bf16.msra.mxu0 0
    %211 = vmatprep.subr.bf16.mxu0 0
    %212 = vmatpush1.bf16.msra.mxu0 0
    %213 = vmatprep.subr.bf16.mxu0 0
    %214 = vmatpush1.bf16.msra.mxu0 0
    %215 = vmatprep.subr.bf16.mxu0 0
    %216 = vmatpush1.bf16.msra.mxu0 0
    %217 = vmatprep.subr.bf16.mxu0 0
    %218 = vmatpush1.bf16.msra.mxu0 0
    %219 = vmatprep.subr.bf16.mxu0 0
    %220 = vmatpush1.bf16.msra.mxu0 0
    %221 = vmatprep.subr.bf16.mxu0 0
    %222 = vmatpush1.bf16.msra.mxu0 0
    %223 = vmatprep.subr.bf16.mxu0 0
    %224 = vmatpush1.bf16.msra.mxu0 0
    %225 = vmatprep.subr.bf16.mxu0 0
    %226 = vmatpush1.bf16.msra.mxu0 0
    %227 = vmatprep.subr.bf16.mxu0 0
    %228 = vmatpush1.bf16.msra.mxu0 0
    %229 = vmatprep.mubr.bf16.mxu0 0
    %230 = vmatmul.mubr.bf16.gmra.mrb[0].mxu0 %v195
    %v231 = vpop.f32.mrb[0].mxu0
    %v232 = vadd.f32 %v186, %v231
    %v233 = vpop.f32.mrb[0].mxu0
    %v234 = vpop.f32.mrb[0].mxu0
    %v235 = vadd.f32 %v186, %v234
    %v236 = vpop.f32.mrb[0].mxu0
    %237 = vdwg.mxu0
    %v238 = vand.u32 2147483647, %v232
    %v239 = vand.u32 2147483647, %v235
    %v240 = vsub.f32 0.0, %v238
    %v241 = vsub.f32 0.0, %v239
    %v242 = vmul.f32 %v240, 1.442695
    %v243 = vpow.pop %v242
    %v244 = vmul.f32 %v241, 1.442695
    %v245 = vpow.pop %v244
    %v246 = vadd.f32 %v243, 1.0
    %v247 = vadd.f32 %v245, 1.0
    %v248 = vrcp.pop %v246
    %v249 = vmul.f32 1.0, %v248
    %v250 = vrcp.pop %v247
    %v251 = vmul.f32 1.0, %v250
    %vm252 = vcmp.ge.f32.partialorder %v232, 0.0
    %vm253 = vcmp.ge.f32.partialorder %v235, 0.0
    %v254 = vmul.f32 %v243, %v249
    %v255 = vmul.f32 %v245, %v251
    %v256 = vsel %vm252, %v249, %v254
    %v257 = vsel %vm253, %v251, %v255
    %v258 = vmul.f32 %v256, 100.0
    %v259 = vmul.f32 %v257, 100.0
    %vm260 = vcmask 64512
    %261 = vst.msk [vmem:[%s3] sm:$0xff] %vm260, %v258
    %262 = vst.msk [vmem:[%s3 + $0x8] sm:$0xff] %vm260, %v259
    // Predicated region
    $region22: #{tpu_custom_call.1} parent=1 // pred_check
      _
    $region23: #{tpu_custom_call.1} parent=1 // pred_check_branch
      %264 = sbr.rel (0) target = $region25
    $region24: #{tpu_custom_call.1} parent=1 // pred_region
      _
    $region25: #{tpu_custom_call.1} parent=1 // pred_fallthru
      _
    // Predicated region
    $region26: #{tpu_custom_call.1} parent=1 // pred_check
      _
    $region27: #{tpu_custom_call.1} parent=1 // pred_check_branch
      %266 = sbr.rel (0) target = $region29
    $region28: #{tpu_custom_call.1} parent=1 // pred_region
      _
    $region29: #{tpu_custom_call.1} parent=1 // pred_fallthru
      _
    %267 = vsyncpa [#allocation3], 1
    %268 = vsyncpa [#allocation5], 1

</llo_original>
